<compile_context>
chip_gen: v5e
topology: v5e:2x2
jax: 0.10.0
libtpu: 0.0.40
codegen_flags: <defaults>
</compile_context>

<pallas_src>
import functools

import jax
import jax.numpy as jnp
from jax.experimental import pallas as pl
from jax.experimental.pallas import tpu as pltpu


def _round_up(x, m):
    return ((x + m - 1) // m) * m


def _largest_divisor_leq(n, cap):
    for d in range(min(n, cap), 0, -1):
        if n % d == 0:
            return d
    return 1


def _pick_tile(total, candidates):
    for c in candidates:
        if total % c == 0:
            return c
    return total


def _pick_batch_tile(batch):
    """8-aligned batch tile with bounded padding waste (no blind 256-row pad)."""
    waste_cap = max(8, batch // 8)
    for cand in (256, 128, 64, 32, 16, 8):
        if _round_up(batch, cand) - batch <= waste_cap:
            return cand
    return 8


# ---------------------------------------------------------------------------
# Kernel 1: serial recurrence  H_t = tanh(emb_t + H_{t-1} @ W_hh)
# ---------------------------------------------------------------------------
def _rnn_recurrence_kernel(h0_ref, emb_ref, whh_ref, h_seq_ref, hT_ref, h_scratch,
                           *, t_chunk):
    tc = pl.program_id(1)

    # New batch tile: (re)load the initial hidden state into the f32 carry.
    @pl.when(tc == 0)
    def _():
        h_scratch[...] = h0_ref[...].astype(jnp.float32)

    whh = whh_ref[...]          # weight tile, loaded once per chunk
    cdt = whh.dtype

    # Static unroll over the time chunk: keeps the whole serial W_hh/tanh chain
    # inside one grid step so per-step emb loads / H stores overlap with the
    # next step's matmul.  Per-step emb load stays inside the loop (small vregs).
    for t in range(t_chunk):
        pre = emb_ref[t].astype(jnp.float32) + jnp.dot(
            h_scratch[...].astype(cdt), whh, preferred_element_type=jnp.float32)
        h_new = jnp.tanh(pre)
        h_scratch[...] = h_new
        h_seq_ref[t] = h_new.astype(h_seq_ref.dtype)

    # Final hidden state (returned as `state`), written once on the last chunk.
    @pl.when(tc == pl.num_programs(1) - 1)
    def _():
        hT_ref[...] = h_scratch[...].astype(hT_ref.dtype)


# ---------------------------------------------------------------------------
# Kernel 2: output head  logits = H @ W_hq + b_q   (batched, fully parallel)
# ---------------------------------------------------------------------------
def _head_kernel(h_ref, whq_ref, bq_ref, y_ref):
    y_ref[...] = (
        jnp.dot(h_ref[...], whq_ref[...], preferred_element_type=jnp.float32)
        + bq_ref[...].astype(jnp.float32)).astype(y_ref.dtype)


@functools.partial(jax.jit, static_argnames=("tile_b", "compute_dtype"))
def rnn_model_forward(inputs, state, w_xh, w_hh, b_h, w_hq, b_q, *,
                      tile_b=None, compute_dtype=jnp.bfloat16):
    """inputs: (batch, num_steps) int tokens; state: (1, batch, num_hiddens).

    Returns (logits (num_steps*batch, vocab_size), new_state (1, batch, num_hiddens)),
    matching RNNModel.forward.
    """
    batch, num_steps = inputs.shape
    vocab_size, num_hiddens = w_xh.shape
    param_dtype = w_hh.dtype

    # Hardware-aligned sizes: lanes -> 128, sublanes -> 8.
    vocab_p = _round_up(vocab_size, 128)
    hid_p = _round_up(num_hiddens, 128)
    if tile_b is None:
        tile_b = _pick_batch_tile(batch)
    assert tile_b % 8 == 0
    batch_p = _round_up(batch, tile_b)
    n_btiles = batch_p // tile_b

    # Time chunking: largest divisor of num_steps <= 32 so the last real step is
    # also the last kernel step (no masking needed for the final state).
    t_chunk = _largest_divisor_leq(num_steps, 32)
    n_tchunks = num_steps // t_chunk

    # --- Embedding gather replaces one_hot @ W_xh; fold b_h in here. ---------
    emb = w_xh[inputs.T].astype(jnp.float32) + b_h.astype(jnp.float32)   # (S,B,H)
    emb = jnp.pad(emb, ((0, 0), (0, batch_p - batch), (0, hid_p - num_hiddens)))
    emb = emb.astype(compute_dtype)

    # Initial hidden state stays f32 end-to-end (carry precision).
    h0 = jnp.pad(state[0].astype(jnp.float32),
                 ((0, batch_p - batch), (0, hid_p - num_hiddens)))

    w_hh_p = jnp.pad(w_hh, ((0, hid_p - num_hiddens),
                            (0, hid_p - num_hiddens))).astype(compute_dtype)

    cbytes = jnp.dtype(compute_dtype).itemsize
    flops_rnn = 2 * num_steps * batch_p * hid_p * hid_p
    bytes_rnn = (num_steps * batch_p * hid_p * cbytes      # emb in
                 + batch_p * hid_p * 4                     # h0 in
                 + hid_p * hid_p * cbytes                  # W_hh
                 + num_steps * batch_p * hid_p * cbytes    # H out
                 + batch_p * hid_p * 4)                    # H_T out

    h_seq, h_last = pl.pallas_call(
        functools.partial(_rnn_recurrence_kernel, t_chunk=t_chunk),
        out_shape=(
            jax.ShapeDtypeStruct((num_steps, batch_p, hid_p), compute_dtype),
            jax.ShapeDtypeStruct((batch_p, hid_p), jnp.float32),
        ),
        grid_spec=pltpu.PrefetchScalarGridSpec(
            num_scalar_prefetch=0,
            grid=(n_btiles, n_tchunks),
            in_specs=[
                pl.BlockSpec((tile_b, hid_p), lambda b, t: (b, 0)),             # h0
                pl.BlockSpec((t_chunk, tile_b, hid_p), lambda b, t: (t, b, 0)), # emb
                pl.BlockSpec((hid_p, hid_p), lambda b, t: (0, 0)),              # W_hh
            ],
            out_specs=[
                pl.BlockSpec((t_chunk, tile_b, hid_p), lambda b, t: (t, b, 0)), # H
                pl.BlockSpec((tile_b, hid_p), lambda b, t: (b, 0)),             # H_T
            ],
            scratch_shapes=[pltpu.VMEM((tile_b, hid_p), jnp.float32)],
        ),
        compiler_params=pltpu.CompilerParams(
            dimension_semantics=("parallel", "arbitrary")),
        cost_estimate=pl.CostEstimate(
            flops=int(flops_rnn),
            transcendentals=int(num_steps * batch_p * hid_p),
            bytes_accessed=int(bytes_rnn)),
    )(h0, emb, w_hh_p)

    # --- Output head: one big batched matmul over M = seq*batch_p rows. ------
    rows = num_steps * batch_p
    h_flat = h_seq.reshape(rows, hid_p)
    w_hq_p = jnp.pad(w_hq, ((0, hid_p - num_hiddens),
                            (0, vocab_p - vocab_size))).astype(compute_dtype)
    b_q_p = jnp.pad(b_q.astype(jnp.float32),
                    (0, vocab_p - vocab_size)).reshape(1, vocab_p)

    tm = _pick_tile(rows, (512, 256, 128, 64, 32, 16, 8))
    tn = _pick_tile(vocab_p, (512, 256, 128))

    flops_head = 2 * rows * hid_p * vocab_p
    bytes_head = (rows * hid_p * cbytes + hid_p * vocab_p * cbytes
                  + vocab_p * 4 + rows * vocab_p * jnp.dtype(param_dtype).itemsize)

    logits_pad = pl.pallas_call(
        _head_kernel,
        out_shape=jax.ShapeDtypeStruct((rows, vocab_p), param_dtype),
        grid_spec=pltpu.PrefetchScalarGridSpec(
            num_scalar_prefetch=0,
            grid=(rows // tm, vocab_p // tn),
            in_specs=[
                pl.BlockSpec((tm, hid_p), lambda i, j: (i, 0)),   # H rows
                pl.BlockSpec((hid_p, tn), lambda i, j: (0, j)),   # W_hq
                pl.BlockSpec((1, tn), lambda i, j: (0, j)),       # b_q
            ],
            out_specs=pl.BlockSpec((tm, tn), lambda i, j: (i, j)),
        ),
        compiler_params=pltpu.CompilerParams(
            dimension_semantics=("parallel", "parallel")),
        cost_estimate=pl.CostEstimate(
            flops=int(flops_head), transcendentals=0,
            bytes_accessed=int(bytes_head)),
    )(h_flat, w_hq_p, b_q_p)

    # Un-pad and match PyTorch layout: rows are time-major, batch-minor.
    logits = logits_pad.reshape(num_steps, batch_p, vocab_p)[:, :batch, :vocab_size]
    logits = logits.reshape(num_steps * batch, vocab_size).astype(param_dtype)
    new_state = h_last[:batch, :num_hiddens].astype(param_dtype)[None, :, :]
    return logits, new_state


def init_params(key, vocab_size, num_hiddens, dtype=jnp.float32):
    """nn.RNN / nn.Linear style init: uniform(+-1/sqrt(num_hiddens))."""
    k1, k2, k3, k4, k5 = jax.random.split(key, 5)
    bound = 1.0 / (num_hiddens ** 0.5)
    w_xh = jax.random.uniform(k1, (vocab_size, num_hiddens), dtype, -bound, bound)
    w_hh = jax.random.uniform(k2, (num_hiddens, num_hiddens), dtype, -bound, bound)
    b_h = jax.random.uniform(k3, (num_hiddens,), dtype, -bound, bound)
    w_hq = jax.random.uniform(k4, (num_hiddens, vocab_size), dtype, -bound, bound)
    b_q = jax.random.uniform(k5, (vocab_size,), dtype, -bound, bound)
    return w_xh, w_hh, b_h, w_hq, b_q


def rnn_model_reference(inputs, state, w_xh, w_hh, b_h, w_hq, b_q):
    """Pure-JAX reference with identical math (tanh RNN + linear head)."""
    vocab_size = w_xh.shape[0]
    x = jax.nn.one_hot(inputs.T, vocab_size, dtype=w_xh.dtype)  # (seq, batch, vocab)
    h = state[0]
    ys = []
    for t in range(x.shape[0]):
        h = jnp.tanh(x[t] @ w_xh + h @ w_hh + b_h)
        ys.append(h @ w_hq + b_q)
    y = jnp.stack(ys, axis=0)                                   # (seq, batch, vocab)
    return y.reshape(-1, vocab_size), h[None, :, :]


def _check(inputs, state0, params, *, compute_dtype, tol, tile_b=None):
    logits, state1 = rnn_model_forward(inputs, state0, *params,
                                       tile_b=tile_b, compute_dtype=compute_dtype)
    logits, state1 = jax.block_until_ready((logits, state1))
    ref_logits, ref_state = rnn_model_reference(inputs, state0, *params)

    batch, num_steps = inputs.shape
    vocab_size, num_hiddens = params[0].shape
    assert logits.shape == (num_steps * batch, vocab_size)
    assert state1.shape == (1, batch, num_hiddens)
    assert jnp.allclose(logits, ref_logits, atol=tol, rtol=tol), (
        float(jnp.max(jnp.abs(logits - ref_logits))))
    assert jnp.allclose(state1, ref_state, atol=tol, rtol=tol), (
        float(jnp.max(jnp.abs(state1 - ref_state))))


if __name__ == "__main__":
    key = jax.random.PRNGKey(0)
    k_in, k_in2, k_par = jax.random.split(key, 3)

    vocab_size, num_hiddens = 28, 32
    params = init_params(k_par, vocab_size, num_hiddens)

    # Config 1: small char-RNN shapes, default bf16 compute path.
    batch, num_steps = 2, 8
    inputs = jax.random.randint(k_in, (batch, num_steps), 0, vocab_size, jnp.int32)
    state0 = jnp.zeros((1, batch, num_hiddens), jnp.float32)   # RNNModel.begin_state
    _check(inputs, state0, params, compute_dtype=jnp.bfloat16, tol=5e-2)

    # Config 2: exercises multiple batch tiles and multiple time chunks
    # (carry re-init + last-chunk state write), f32 compute for a tight check.
    batch2, num_steps2 = 16, 48
    inputs2 = jax.random.randint(k_in2, (batch2, num_steps2), 0, vocab_size, jnp.int32)
    state0_2 = jnp.zeros((1, batch2, num_hiddens), jnp.float32)
    _check(inputs2, state0_2, params, compute_dtype=jnp.float32, tol=2e-2, tile_b=8)

    print("KERNEL_OK")
</pallas_src>

<mosaic_0001>
module attributes {stable_mosaic.version = 11 : i64} {
  func.func @_head_kernel(%arg0: i32, %arg1: i32, %arg2: memref<64x128xbf16, #tpu.memory_space<vmem>>, %arg3: memref<128x128xbf16, #tpu.memory_space<vmem>>, %arg4: memref<1x128xf32, #tpu.memory_space<vmem>>, %arg5: memref<64x128xf32, #tpu.memory_space<vmem>>) attributes {dimension_semantics = [#tpu.dimension_semantics<parallel>, #tpu.dimension_semantics<parallel>], iteration_bounds = array<i64: 1, 1>, scalar_prefetch = 0 : i64, scratch_operands = 0 : i64, tpu.core_type = #tpu.core_type<tc>, window_params = [{transform_indices = @transform_0, window_bounds = array<i64: 64, 128>}, {transform_indices = @transform_1, window_bounds = array<i64: 128, 128>}, {transform_indices = @transform_2, window_bounds = array<i64: 1, 128>}, {transform_indices = @transform_3, window_bounds = array<i64: 64, 128>}]} {
    %c0 = arith.constant 0 : index
    %c0_0 = arith.constant 0 : index
    %0 = vector.load %arg2[%c0, %c0_0] : memref<64x128xbf16, #tpu.memory_space<vmem>>, vector<64x128xbf16>
    %c0_1 = arith.constant 0 : index
    %c0_2 = arith.constant 0 : index
    %1 = vector.load %arg3[%c0_1, %c0_2] : memref<128x128xbf16, #tpu.memory_space<vmem>>, vector<128x128xbf16>
    %cst = arith.constant dense<0.000000e+00> : vector<64x128xf32>
    %2 = tpu.matmul %0, %1, %cst {dimension_numbers = #tpu.dot_dimension_numbers<[1], [0], [0], [1], [0, 0, 1, 1], [], []>} : vector<64x128xbf16>, vector<128x128xbf16>, vector<64x128xf32> -> vector<64x128xf32>
    %c0_3 = arith.constant 0 : index
    %c0_4 = arith.constant 0 : index
    %3 = vector.load %arg4[%c0_3, %c0_4] : memref<1x128xf32, #tpu.memory_space<vmem>>, vector<1x128xf32>
    %4 = vector.broadcast %3 : vector<1x128xf32> to vector<64x128xf32>
    %5 = arith.addf %2, %4 : vector<64x128xf32>
    %c0_5 = arith.constant 0 : index
    %c0_6 = arith.constant 0 : index
    %6 = vector.load %arg5[%c0_5, %c0_6] : memref<64x128xf32, #tpu.memory_space<vmem>>, vector<64x128xf32>
    tpu.vector_store %arg5[%c0_5, %c0_6], %5 {strides = array<i32>} : memref<64x128xf32, #tpu.memory_space<vmem>>, vector<64x128xf32>,
    return
  }
  func.func @transform_0(%arg0: i32, %arg1: i32) -> (i32, i32) {
    %c0_i32 = arith.constant 0 : i32
    %c0_i32_0 = arith.constant 0 : i32
    return %arg0, %c0_i32 : i32, i32
  }
  func.func @transform_1(%arg0: i32, %arg1: i32) -> (i32, i32) {
    %c0_i32 = arith.constant 0 : i32
    %c0_i32_0 = arith.constant 0 : i32
    return %c0_i32, %arg1 : i32, i32
  }
  func.func @transform_2(%arg0: i32, %arg1: i32) -> (i32, i32) {
    %c0_i32 = arith.constant 0 : i32
    %c0_i32_0 = arith.constant 0 : i32
    return %c0_i32, %arg1 : i32, i32
  }
  func.func @transform_3(%arg0: i32, %arg1: i32) -> (i32, i32) {
    %c0_i32 = arith.constant 0 : i32
    return %arg0, %arg1 : i32, i32
  }
}

module attributes {stable_mosaic.version = 11 : i64} {
  func.func @_rnn_recurrence_kernel(%arg0: i32, %arg1: i32, %arg2: memref<8x128xf32, #tpu.memory_space<vmem>>, %arg3: memref<8x8x128xbf16, #tpu.memory_space<vmem>>, %arg4: memref<128x128xbf16, #tpu.memory_space<vmem>>, %arg5: memref<8x8x128xbf16, #tpu.memory_space<vmem>>, %arg6: memref<8x128xf32, #tpu.memory_space<vmem>>, %arg7: memref<8x128xf32, #tpu.memory_space<vmem>>) attributes {dimension_semantics = [#tpu.dimension_semantics<parallel>, #tpu.dimension_semantics<arbitrary>], iteration_bounds = array<i64: 1, 1>, scalar_prefetch = 0 : i64, scratch_operands = 1 : i64, tpu.core_type = #tpu.core_type<tc>, window_params = [{transform_indices = @transform_0, window_bounds = array<i64: 8, 128>}, {transform_indices = @transform_1, window_bounds = array<i64: 8, 8, 128>}, {pipeline_mode = #tpu.pipeline_mode<synchronous>, transform_indices = @transform_2, window_bounds = array<i64: 128, 128>}, {transform_indices = @transform_3, window_bounds = array<i64: 8, 8, 128>}, {transform_indices = @transform_4, window_bounds = array<i64: 8, 128>}]} {
    %c0_i32 = arith.constant 0 : i32
    %0 = arith.cmpi eq, %arg1, %c0_i32 : i32
    %1 = arith.extui %0 : i1 to i32
    %c0_i32_0 = arith.constant 0 : i32
    %2 = arith.cmpi ne, %1, %c0_i32_0 : i32
    scf.if %2 {
      %c0_84 = arith.constant 0 : index
      %c0_85 = arith.constant 0 : index
      %111 = vector.load %arg2[%c0_84, %c0_85] : memref<8x128xf32, #tpu.memory_space<vmem>>, vector<8x128xf32>
      %c0_86 = arith.constant 0 : index
      %c0_87 = arith.constant 0 : index
      %112 = vector.load %arg7[%c0_86, %c0_87] : memref<8x128xf32, #tpu.memory_space<vmem>>, vector<8x128xf32>
      tpu.vector_store %arg7[%c0_86, %c0_87], %111 {strides = array<i32>} : memref<8x128xf32, #tpu.memory_space<vmem>>, vector<8x128xf32>,
    } else {
    }
    %c0 = arith.constant 0 : index
    %c0_1 = arith.constant 0 : index
    %3 = vector.load %arg4[%c0, %c0_1] : memref<128x128xbf16, #tpu.memory_space<vmem>>, vector<128x128xbf16>
    %c0_2 = arith.constant 0 : index
    %c0_3 = arith.constant 0 : index
    %c0_4 = arith.constant 0 : index
    %4 = vector.load %arg3[%c0_2, %c0_3, %c0_4] : memref<8x8x128xbf16, #tpu.memory_space<vmem>>, vector<1x8x128xbf16>
    %5 = vector.shape_cast %4 : vector<1x8x128xbf16> to vector<8x128xbf16>
    %6 = arith.extf %5 : vector<8x128xbf16> to vector<8x128xf32>
    %c0_5 = arith.constant 0 : index
    %c0_6 = arith.constant 0 : index
    %7 = vector.load %arg7[%c0_5, %c0_6] : memref<8x128xf32, #tpu.memory_space<vmem>>, vector<8x128xf32>
    %8 = arith.truncf %7 : vector<8x128xf32> to vector<8x128xbf16>
    %cst = arith.constant dense<0.000000e+00> : vector<8x128xf32>
    %9 = tpu.matmul %8, %3, %cst {dimension_numbers = #tpu.dot_dimension_numbers<[1], [0], [0], [1], [0, 0, 1, 1], [], []>} : vector<8x128xbf16>, vector<128x128xbf16>, vector<8x128xf32> -> vector<8x128xf32>
    %10 = arith.addf %6, %9 : vector<8x128xf32>
    %11 = math.tanh %10 : vector<8x128xf32>
    %c0_7 = arith.constant 0 : index
    %c0_8 = arith.constant 0 : index
    %12 = vector.load %arg7[%c0_7, %c0_8] : memref<8x128xf32, #tpu.memory_space<vmem>>, vector<8x128xf32>
    tpu.vector_store %arg7[%c0_7, %c0_8], %11 {strides = array<i32>} : memref<8x128xf32, #tpu.memory_space<vmem>>, vector<8x128xf32>,
    %13 = arith.truncf %11 : vector<8x128xf32> to vector<8x128xbf16>
    %c0_9 = arith.constant 0 : index
    %c0_10 = arith.constant 0 : index
    %c0_11 = arith.constant 0 : index
    %14 = vector.load %arg5[%c0_9, %c0_10, %c0_11] : memref<8x8x128xbf16, #tpu.memory_space<vmem>>, vector<1x8x128xbf16>
    %15 = vector.shape_cast %14 : vector<1x8x128xbf16> to vector<8x128xbf16>
    %16 = vector.shape_cast %13 : vector<8x128xbf16> to vector<1x8x128xbf16>
    tpu.vector_store %arg5[%c0_9, %c0_10, %c0_11], %16 {strides = array<i32>} : memref<8x8x128xbf16, #tpu.memory_space<vmem>>, vector<1x8x128xbf16>,
    %c1 = arith.constant 1 : index
    %c0_12 = arith.constant 0 : index
    %c0_13 = arith.constant 0 : index
    %17 = vector.load %arg3[%c1, %c0_12, %c0_13] : memref<8x8x128xbf16, #tpu.memory_space<vmem>>, vector<1x8x128xbf16>
    %18 = vector.shape_cast %17 : vector<1x8x128xbf16> to vector<8x128xbf16>
    %19 = arith.extf %18 : vector<8x128xbf16> to vector<8x128xf32>
    %c0_14 = arith.constant 0 : index
    %c0_15 = arith.constant 0 : index
    %20 = vector.load %arg7[%c0_14, %c0_15] : memref<8x128xf32, #tpu.memory_space<vmem>>, vector<8x128xf32>
    %21 = arith.truncf %20 : vector<8x128xf32> to vector<8x128xbf16>
    %cst_16 = arith.constant dense<0.000000e+00> : vector<8x128xf32>
    %22 = tpu.matmul %21, %3, %cst_16 {dimension_numbers = #tpu.dot_dimension_numbers<[1], [0], [0], [1], [0, 0, 1, 1], [], []>} : vector<8x128xbf16>, vector<128x128xbf16>, vector<8x128xf32> -> vector<8x128xf32>
    %23 = arith.addf %19, %22 : vector<8x128xf32>
    %24 = math.tanh %23 : vector<8x128xf32>
    %c0_17 = arith.constant 0 : index
    %c0_18 = arith.constant 0 : index
    %25 = vector.load %arg7[%c0_17, %c0_18] : memref<8x128xf32, #tpu.memory_space<vmem>>, vector<8x128xf32>
    tpu.vector_store %arg7[%c0_17, %c0_18], %24 {strides = array<i32>} : memref<8x128xf32, #tpu.memory_space<vmem>>, vector<8x128xf32>,
    %26 = arith.truncf %24 : vector<8x128xf32> to vector<8x128xbf16>
    %c1_19 = arith.constant 1 : index
    %c0_20 = arith.constant 0 : index
    %c0_21 = arith.constant 0 : index
    %27 = vector.load %arg5[%c1_19, %c0_20, %c0_21] : memref<8x8x128xbf16, #tpu.memory_space<vmem>>, vector<1x8x128xbf16>
    %28 = vector.shape_cast %27 : vector<1x8x128xbf16> to vector<8x128xbf16>
    %29 = vector.shape_cast %26 : vector<8x128xbf16> to vector<1x8x128xbf16>
    tpu.vector_store %arg5[%c1_19, %c0_20, %c0_21], %29 {strides = array<i32>} : memref<8x8x128xbf16, #tpu.memory_space<vmem>>, vector<1x8x128xbf16>,
    %c2 = arith.constant 2 : index
    %c0_22 = arith.constant 0 : index
    %c0_23 = arith.constant 0 : index
    %30 = vector.load %arg3[%c2, %c0_22, %c0_23] : memref<8x8x128xbf16, #tpu.memory_space<vmem>>, vector<1x8x128xbf16>
    %31 = vector.shape_cast %30 : vector<1x8x128xbf16> to vector<8x128xbf16>
    %32 = arith.extf %31 : vector<8x128xbf16> to vector<8x128xf32>
    %c0_24 = arith.constant 0 : index
    %c0_25 = arith.constant 0 : index
    %33 = vector.load %arg7[%c0_24, %c0_25] : memref<8x128xf32, #tpu.memory_space<vmem>>, vector<8x128xf32>
    %34 = arith.truncf %33 : vector<8x128xf32> to vector<8x128xbf16>
    %cst_26 = arith.constant dense<0.000000e+00> : vector<8x128xf32>
    %35 = tpu.matmul %34, %3, %cst_26 {dimension_numbers = #tpu.dot_dimension_numbers<[1], [0], [0], [1], [0, 0, 1, 1], [], []>} : vector<8x128xbf16>, vector<128x128xbf16>, vector<8x128xf32> -> vector<8x128xf32>
    %36 = arith.addf %32, %35 : vector<8x128xf32>
    %37 = math.tanh %36 : vector<8x128xf32>
    %c0_27 = arith.constant 0 : index
    %c0_28 = arith.constant 0 : index
    %38 = vector.load %arg7[%c0_27, %c0_28] : memref<8x128xf32, #tpu.memory_space<vmem>>, vector<8x128xf32>
    tpu.vector_store %arg7[%c0_27, %c0_28], %37 {strides = array<i32>} : memref<8x128xf32, #tpu.memory_space<vmem>>, vector<8x128xf32>,
    %39 = arith.truncf %37 : vector<8x128xf32> to vector<8x128xbf16>
    %c2_29 = arith.constant 2 : index
    %c0_30 = arith.constant 0 : index
    %c0_31 = arith.constant 0 : index
    %40 = vector.load %arg5[%c2_29, %c0_30, %c0_31] : memref<8x8x128xbf16, #tpu.memory_space<vmem>>, vector<1x8x128xbf16>
    %41 = vector.shape_cast %40 : vector<1x8x128xbf16> to vector<8x128xbf16>
    %42 = vector.shape_cast %39 : vector<8x128xbf16> to vector<1x8x128xbf16>
    tpu.vector_store %arg5[%c2_29, %c0_30, %c0_31], %42 {strides = array<i32>} : memref<8x8x128xbf16, #tpu.memory_space<vmem>>, vector<1x8x128xbf16>,
    %c3 = arith.constant 3 : index
    %c0_32 = arith.constant 0 : index
    %c0_33 = arith.constant 0 : index
    %43 = vector.load %arg3[%c3, %c0_32, %c0_33] : memref<8x8x128xbf16, #tpu.memory_space<vmem>>, vector<1x8x128xbf16>
    %44 = vector.shape_cast %43 : vector<1x8x128xbf16> to vector<8x128xbf16>
    %45 = arith.extf %44 : vector<8x128xbf16> to vector<8x128xf32>
    %c0_34 = arith.constant 0 : index
    %c0_35 = arith.constant 0 : index
    %46 = vector.load %arg7[%c0_34, %c0_35] : memref<8x128xf32, #tpu.memory_space<vmem>>, vector<8x128xf32>
    %47 = arith.truncf %46 : vector<8x128xf32> to vector<8x128xbf16>
    %cst_36 = arith.constant dense<0.000000e+00> : vector<8x128xf32>
    %48 = tpu.matmul %47, %3, %cst_36 {dimension_numbers = #tpu.dot_dimension_numbers<[1], [0], [0], [1], [0, 0, 1, 1], [], []>} : vector<8x128xbf16>, vector<128x128xbf16>, vector<8x128xf32> -> vector<8x128xf32>
    %49 = arith.addf %45, %48 : vector<8x128xf32>
    %50 = math.tanh %49 : vector<8x128xf32>
    %c0_37 = arith.constant 0 : index
    %c0_38 = arith.constant 0 : index
    %51 = vector.load %arg7[%c0_37, %c0_38] : memref<8x128xf32, #tpu.memory_space<vmem>>, vector<8x128xf32>
    tpu.vector_store %arg7[%c0_37, %c0_38], %50 {strides = array<i32>} : memref<8x128xf32, #tpu.memory_space<vmem>>, vector<8x128xf32>,
    %52 = arith.truncf %50 : vector<8x128xf32> to vector<8x128xbf16>
    %c3_39 = arith.constant 3 : index
    %c0_40 = arith.constant 0 : index
    %c0_41 = arith.constant 0 : index
    %53 = vector.load %arg5[%c3_39, %c0_40, %c0_41] : memref<8x8x128xbf16, #tpu.memory_space<vmem>>, vector<1x8x128xbf16>
    %54 = vector.shape_cast %53 : vector<1x8x128xbf16> to vector<8x128xbf16>
    %55 = vector.shape_cast %52 : vector<8x128xbf16> to vector<1x8x128xbf16>
    tpu.vector_store %arg5[%c3_39, %c0_40, %c0_41], %55 {strides = array<i32>} : memref<8x8x128xbf16, #tpu.memory_space<vmem>>, vector<1x8x128xbf16>,
    %c4 = arith.constant 4 : index
    %c0_42 = arith.constant 0 : index
    %c0_43 = arith.constant 0 : index
    %56 = vector.load %arg3[%c4, %c0_42, %c0_43] : memref<8x8x128xbf16, #tpu.memory_space<vmem>>, vector<1x8x128xbf16>
    %57 = vector.shape_cast %56 : vector<1x8x128xbf16> to vector<8x128xbf16>
    %58 = arith.extf %57 : vector<8x128xbf16> to vector<8x128xf32>
    %c0_44 = arith.constant 0 : index
    %c0_45 = arith.constant 0 : index
    %59 = vector.load %arg7[%c0_44, %c0_45] : memref<8x128xf32, #tpu.memory_space<vmem>>, vector<8x128xf32>
    %60 = arith.truncf %59 : vector<8x128xf32> to vector<8x128xbf16>
    %cst_46 = arith.constant dense<0.000000e+00> : vector<8x128xf32>
    %61 = tpu.matmul %60, %3, %cst_46 {dimension_numbers = #tpu.dot_dimension_numbers<[1], [0], [0], [1], [0, 0, 1, 1], [], []>} : vector<8x128xbf16>, vector<128x128xbf16>, vector<8x128xf32> -> vector<8x128xf32>
    %62 = arith.addf %58, %61 : vector<8x128xf32>
    %63 = math.tanh %62 : vector<8x128xf32>
    %c0_47 = arith.constant 0 : index
    %c0_48 = arith.constant 0 : index
    %64 = vector.load %arg7[%c0_47, %c0_48] : memref<8x128xf32, #tpu.memory_space<vmem>>, vector<8x128xf32>
    tpu.vector_store %arg7[%c0_47, %c0_48], %63 {strides = array<i32>} : memref<8x128xf32, #tpu.memory_space<vmem>>, vector<8x128xf32>,
    %65 = arith.truncf %63 : vector<8x128xf32> to vector<8x128xbf16>
    %c4_49 = arith.constant 4 : index
    %c0_50 = arith.constant 0 : index
    %c0_51 = arith.constant 0 : index
    %66 = vector.load %arg5[%c4_49, %c0_50, %c0_51] : memref<8x8x128xbf16, #tpu.memory_space<vmem>>, vector<1x8x128xbf16>
    %67 = vector.shape_cast %66 : vector<1x8x128xbf16> to vector<8x128xbf16>
    %68 = vector.shape_cast %65 : vector<8x128xbf16> to vector<1x8x128xbf16>
    tpu.vector_store %arg5[%c4_49, %c0_50, %c0_51], %68 {strides = array<i32>} : memref<8x8x128xbf16, #tpu.memory_space<vmem>>, vector<1x8x128xbf16>,
    %c5 = arith.constant 5 : index
    %c0_52 = arith.constant 0 : index
    %c0_53 = arith.constant 0 : index
    %69 = vector.load %arg3[%c5, %c0_52, %c0_53] : memref<8x8x128xbf16, #tpu.memory_space<vmem>>, vector<1x8x128xbf16>
    %70 = vector.shape_cast %69 : vector<1x8x128xbf16> to vector<8x128xbf16>
    %71 = arith.extf %70 : vector<8x128xbf16> to vector<8x128xf32>
    %c0_54 = arith.constant 0 : index
    %c0_55 = arith.constant 0 : index
    %72 = vector.load %arg7[%c0_54, %c0_55] : memref<8x128xf32, #tpu.memory_space<vmem>>, vector<8x128xf32>
    %73 = arith.truncf %72 : vector<8x128xf32> to vector<8x128xbf16>
    %cst_56 = arith.constant dense<0.000000e+00> : vector<8x128xf32>
    %74 = tpu.matmul %73, %3, %cst_56 {dimension_numbers = #tpu.dot_dimension_numbers<[1], [0], [0], [1], [0, 0, 1, 1], [], []>} : vector<8x128xbf16>, vector<128x128xbf16>, vector<8x128xf32> -> vector<8x128xf32>
    %75 = arith.addf %71, %74 : vector<8x128xf32>
    %76 = math.tanh %75 : vector<8x128xf32>
    %c0_57 = arith.constant 0 : index
    %c0_58 = arith.constant 0 : index
    %77 = vector.load %arg7[%c0_57, %c0_58] : memref<8x128xf32, #tpu.memory_space<vmem>>, vector<8x128xf32>
    tpu.vector_store %arg7[%c0_57, %c0_58], %76 {strides = array<i32>} : memref<8x128xf32, #tpu.memory_space<vmem>>, vector<8x128xf32>,
    %78 = arith.truncf %76 : vector<8x128xf32> to vector<8x128xbf16>
    %c5_59 = arith.constant 5 : index
    %c0_60 = arith.constant 0 : index
    %c0_61 = arith.constant 0 : index
    %79 = vector.load %arg5[%c5_59, %c0_60, %c0_61] : memref<8x8x128xbf16, #tpu.memory_space<vmem>>, vector<1x8x128xbf16>
    %80 = vector.shape_cast %79 : vector<1x8x128xbf16> to vector<8x128xbf16>
    %81 = vector.shape_cast %78 : vector<8x128xbf16> to vector<1x8x128xbf16>
    tpu.vector_store %arg5[%c5_59, %c0_60, %c0_61], %81 {strides = array<i32>} : memref<8x8x128xbf16, #tpu.memory_space<vmem>>, vector<1x8x128xbf16>,
    %c6 = arith.constant 6 : index
    %c0_62 = arith.constant 0 : index
    %c0_63 = arith.constant 0 : index
    %82 = vector.load %arg3[%c6, %c0_62, %c0_63] : memref<8x8x128xbf16, #tpu.memory_space<vmem>>, vector<1x8x128xbf16>
    %83 = vector.shape_cast %82 : vector<1x8x128xbf16> to vector<8x128xbf16>
    %84 = arith.extf %83 : vector<8x128xbf16> to vector<8x128xf32>
    %c0_64 = arith.constant 0 : index
    %c0_65 = arith.constant 0 : index
    %85 = vector.load %arg7[%c0_64, %c0_65] : memref<8x128xf32, #tpu.memory_space<vmem>>, vector<8x128xf32>
    %86 = arith.truncf %85 : vector<8x128xf32> to vector<8x128xbf16>
    %cst_66 = arith.constant dense<0.000000e+00> : vector<8x128xf32>
    %87 = tpu.matmul %86, %3, %cst_66 {dimension_numbers = #tpu.dot_dimension_numbers<[1], [0], [0], [1], [0, 0, 1, 1], [], []>} : vector<8x128xbf16>, vector<128x128xbf16>, vector<8x128xf32> -> vector<8x128xf32>
    %88 = arith.addf %84, %87 : vector<8x128xf32>
    %89 = math.tanh %88 : vector<8x128xf32>
    %c0_67 = arith.constant 0 : index
    %c0_68 = arith.constant 0 : index
    %90 = vector.load %arg7[%c0_67, %c0_68] : memref<8x128xf32, #tpu.memory_space<vmem>>, vector<8x128xf32>
    tpu.vector_store %arg7[%c0_67, %c0_68], %89 {strides = array<i32>} : memref<8x128xf32, #tpu.memory_space<vmem>>, vector<8x128xf32>,
    %91 = arith.truncf %89 : vector<8x128xf32> to vector<8x128xbf16>
    %c6_69 = arith.constant 6 : index
    %c0_70 = arith.constant 0 : index
    %c0_71 = arith.constant 0 : index
    %92 = vector.load %arg5[%c6_69, %c0_70, %c0_71] : memref<8x8x128xbf16, #tpu.memory_space<vmem>>, vector<1x8x128xbf16>
    %93 = vector.shape_cast %92 : vector<1x8x128xbf16> to vector<8x128xbf16>
    %94 = vector.shape_cast %91 : vector<8x128xbf16> to vector<1x8x128xbf16>
    tpu.vector_store %arg5[%c6_69, %c0_70, %c0_71], %94 {strides = array<i32>} : memref<8x8x128xbf16, #tpu.memory_space<vmem>>, vector<1x8x128xbf16>,
    %c7 = arith.constant 7 : index
    %c0_72 = arith.constant 0 : index
    %c0_73 = arith.constant 0 : index
    %95 = vector.load %arg3[%c7, %c0_72, %c0_73] : memref<8x8x128xbf16, #tpu.memory_space<vmem>>, vector<1x8x128xbf16>
    %96 = vector.shape_cast %95 : vector<1x8x128xbf16> to vector<8x128xbf16>
    %97 = arith.extf %96 : vector<8x128xbf16> to vector<8x128xf32>
    %c0_74 = arith.constant 0 : index
    %c0_75 = arith.constant 0 : index
    %98 = vector.load %arg7[%c0_74, %c0_75] : memref<8x128xf32, #tpu.memory_space<vmem>>, vector<8x128xf32>
    %99 = arith.truncf %98 : vector<8x128xf32> to vector<8x128xbf16>
    %cst_76 = arith.constant dense<0.000000e+00> : vector<8x128xf32>
    %100 = tpu.matmul %99, %3, %cst_76 {dimension_numbers = #tpu.dot_dimension_numbers<[1], [0], [0], [1], [0, 0, 1, 1], [], []>} : vector<8x128xbf16>, vector<128x128xbf16>, vector<8x128xf32> -> vector<8x128xf32>
    %101 = arith.addf %97, %100 : vector<8x128xf32>
    %102 = math.tanh %101 : vector<8x128xf32>
    %c0_77 = arith.constant 0 : index
    %c0_78 = arith.constant 0 : index
    %103 = vector.load %arg7[%c0_77, %c0_78] : memref<8x128xf32, #tpu.memory_space<vmem>>, vector<8x128xf32>
    tpu.vector_store %arg7[%c0_77, %c0_78], %102 {strides = array<i32>} : memref<8x128xf32, #tpu.memory_space<vmem>>, vector<8x128xf32>,
    %104 = arith.truncf %102 : vector<8x128xf32> to vector<8x128xbf16>
    %c7_79 = arith.constant 7 : index
    %c0_80 = arith.constant 0 : index
    %c0_81 = arith.constant 0 : index
    %105 = vector.load %arg5[%c7_79, %c0_80, %c0_81] : memref<8x8x128xbf16, #tpu.memory_space<vmem>>, vector<1x8x128xbf16>
    %106 = vector.shape_cast %105 : vector<1x8x128xbf16> to vector<8x128xbf16>
    %107 = vector.shape_cast %104 : vector<8x128xbf16> to vector<1x8x128xbf16>
    tpu.vector_store %arg5[%c7_79, %c0_80, %c0_81], %107 {strides = array<i32>} : memref<8x8x128xbf16, #tpu.memory_space<vmem>>, vector<1x8x128xbf16>,
    %c0_i32_82 = arith.constant 0 : i32
    %108 = arith.cmpi eq, %arg1, %c0_i32_82 : i32
    %109 = arith.extui %108 : i1 to i32
    %c0_i32_83 = arith.constant 0 : i32
    %110 = arith.cmpi ne, %109, %c0_i32_83 : i32
    scf.if %110 {
      %c0_84 = arith.constant 0 : index
      %c0_85 = arith.constant 0 : index
      %111 = vector.load %arg7[%c0_84, %c0_85] : memref<8x128xf32, #tpu.memory_space<vmem>>, vector<8x128xf32>
      %c0_86 = arith.constant 0 : index
      %c0_87 = arith.constant 0 : index
      %112 = vector.load %arg6[%c0_86, %c0_87] : memref<8x128xf32, #tpu.memory_space<vmem>>, vector<8x128xf32>
      tpu.vector_store %arg6[%c0_86, %c0_87], %111 {strides = array<i32>} : memref<8x128xf32, #tpu.memory_space<vmem>>, vector<8x128xf32>,
    } else {
    }
    return
  }
  func.func @transform_0(%arg0: i32, %arg1: i32) -> (i32, i32) {
    %c0_i32 = arith.constant 0 : i32
    %c0_i32_0 = arith.constant 0 : i32
    return %arg0, %c0_i32 : i32, i32
  }
  func.func @transform_1(%arg0: i32, %arg1: i32) -> (i32, i32, i32) {
    %c0_i32 = arith.constant 0 : i32
    %c0_i32_0 = arith.constant 0 : i32
    return %arg1, %arg0, %c0_i32 : i32, i32, i32
  }
  func.func @transform_2(%arg0: i32, %arg1: i32) -> (i32, i32) {
    %c0_i32 = arith.constant 0 : i32
    %c0_i32_0 = arith.constant 0 : i32
    %c0_i32_1 = arith.constant 0 : i32
    return %c0_i32, %c0_i32_0 : i32, i32
  }
  func.func @transform_3(%arg0: i32, %arg1: i32) -> (i32, i32, i32) {
    %c0_i32 = arith.constant 0 : i32
    %c0_i32_0 = arith.constant 0 : i32
    return %arg1, %arg0, %c0_i32 : i32, i32, i32
  }
  func.func @transform_4(%arg0: i32, %arg1: i32) -> (i32, i32) {
    %c0_i32 = arith.constant 0 : i32
    %c0_i32_0 = arith.constant 0 : i32
    return %arg0, %c0_i32 : i32, i32
  }
}

</mosaic_0001>

<llo_original>
// kernel: rnn_model_forward.3
$region0: #{rnn_model_forward.3}
  #allocation0 [shape = 'u32[]', space=smem, size = 0x4, offset = 0x4, fixed_abs, tag = 'smem constant byte address 0x4 - core index']
  #allocation1 [shape = 'u32[72,128]{1,0:T(1,128)}', space=vmem, size = 0x9000, scoped, tag = 'internal scratch']
  %s0 = inlined_call_operand.vmem [shape: bf16[64,128], index: 0, kind: input, shape index: {}]
  %s1 = inlined_call_operand.vmem [shape: bf16[128,128], index: 1, kind: input, shape index: {}]
  %s2 = inlined_call_operand.vmem [shape: f32[1,128], index: 2, kind: input, shape index: {}]
  %s3 = inlined_call_operand.vmem [shape: f32[64,128], index: 3, kind: output, shape index: {}]
  %s4 = sld [smem:[#allocation0]]
  $region22: #{rnn_model_forward.3} parent=0
    _
  %s6 = ssub.s32 1, %s4
  %s7 = scalar_select 0, %s6, %s4
  // Predicated region
  $region2: #{rnn_model_forward.3} parent=0 // pred_check
    _
  $region3: #{rnn_model_forward.3} parent=0 // pred_check_branch
    %9 = sbr.rel (0) target = $region5
  $region4: #{rnn_model_forward.3} parent=0 // pred_region
    _
  $region5: #{rnn_model_forward.3} parent=0 // pred_fallthru
    _
  // Predicated region
  $region6: #{rnn_model_forward.3} parent=0 // pred_check
    _
  $region7: #{rnn_model_forward.3} parent=0 // pred_check_branch
    %11 = sbr.rel (0) target = $region9
  $region8: #{rnn_model_forward.3} parent=0 // pred_region
    _
  $region9: #{rnn_model_forward.3} parent=0 // pred_fallthru
    _
  // Predicated region
  $region10: #{rnn_model_forward.3} parent=0 // pred_check
    _
  $region11: #{rnn_model_forward.3} parent=0 // pred_check_branch
    %13 = sbr.rel (0) target = $region13
  $region12: #{rnn_model_forward.3} parent=0 // pred_region
    _
  $region13: #{rnn_model_forward.3} parent=0 // pred_fallthru
    _
  %v14 = vld [vmem:[%s0] sm:$0xf]
  %v15 = vld [vmem:[%s0 + $0x4] sm:$0xf]
  %v16 = vld [vmem:[%s0 + $0x8] sm:$0xf]
  %v17 = vld [vmem:[%s0 + $0xc] sm:$0xf]
  %v18 = vld [vmem:[%s0 + $0x10] sm:$0xf]
  %v19 = vld [vmem:[%s0 + $0x14] sm:$0xf]
  %v20 = vld [vmem:[%s0 + $0x18] sm:$0xf]
  %v21 = vld [vmem:[%s0 + $0x1c] sm:$0xf]
  %v22 = vld [vmem:[%s1] sm:$0xf]
  %v23 = vld [vmem:[%s1 + $0x4] sm:$0xf]
  %v24 = vld [vmem:[%s1 + $0x8] sm:$0xf]
  %v25 = vld [vmem:[%s1 + $0xc] sm:$0xf]
  %v26 = vld [vmem:[%s1 + $0x10] sm:$0xf]
  %v27 = vld [vmem:[%s1 + $0x14] sm:$0xf]
  %v28 = vld [vmem:[%s1 + $0x18] sm:$0xf]
  %v29 = vld [vmem:[%s1 + $0x1c] sm:$0xf]
  %v30 = vld [vmem:[%s1 + $0x20] sm:$0xf]
  %v31 = vld [vmem:[%s1 + $0x24] sm:$0xf]
  %v32 = vld [vmem:[%s1 + $0x28] sm:$0xf]
  %v33 = vld [vmem:[%s1 + $0x2c] sm:$0xf]
  %v34 = vld [vmem:[%s1 + $0x30] sm:$0xf]
  %v35 = vld [vmem:[%s1 + $0x34] sm:$0xf]
  %v36 = vld [vmem:[%s1 + $0x38] sm:$0xf]
  %v37 = vld [vmem:[%s1 + $0x3c] sm:$0xf]
  %v38 = vld [vmem:[%s2] sm:$0x1]
  %v40 = vperm.slane %v38, 0
  %v50 = vunpack.c.l.b16 %v14
  %v51 = vunpack.c.l.b16 %v15
  %v52 = vunpack.c.l.b16 %v16
  %v53 = vunpack.c.l.b16 %v17
  %v54 = vunpack.c.l.b16 %v18
  %v55 = vunpack.c.l.b16 %v19
  %v56 = vunpack.c.l.b16 %v20
  %v57 = vunpack.c.l.b16 %v21
  %v58 = vpack.c.b16 %v51, %v50
  %v59 = vpack.c.b16 %v53, %v52
  %v60 = vpack.c.b16 %v55, %v54
  %v61 = vpack.c.b16 %v57, %v56
  %v82 = vunpack.c.l.b16 %v22
  %v83 = vunpack.c.l.b16 %v23
  %v84 = vunpack.c.l.b16 %v24
  %v85 = vunpack.c.l.b16 %v25
  %v86 = vunpack.c.l.b16 %v26
  %v87 = vunpack.c.l.b16 %v27
  %v88 = vunpack.c.l.b16 %v28
  %v89 = vunpack.c.l.b16 %v29
  %v90 = vunpack.c.l.b16 %v30
  %v91 = vunpack.c.l.b16 %v31
  %v92 = vunpack.c.l.b16 %v32
  %v93 = vunpack.c.l.b16 %v33
  %v94 = vunpack.c.l.b16 %v34
  %v95 = vunpack.c.l.b16 %v35
  %v96 = vunpack.c.l.b16 %v36
  %v97 = vunpack.c.l.b16 %v37
  %v98 = vpack.c.b16 %v83, %v82
  %v99 = vpack.c.b16 %v85, %v84
  %v100 = vpack.c.b16 %v87, %v86
  %v101 = vpack.c.b16 %v89, %v88
  %v102 = vpack.c.b16 %v91, %v90
  %v103 = vpack.c.b16 %v93, %v92
  %v104 = vpack.c.b16 %v95, %v94
  %v105 = vpack.c.b16 %v97, %v96
  %114 = vmatpush.bf16.msra.mxu0 %v105
  %115 = vmatpush.bf16.msra.mxu0 %v104
  %116 = vmatpush.bf16.msra.mxu0 %v103
  %117 = vmatpush.bf16.msra.mxu0 %v102
  %118 = vmatpush.bf16.msra.mxu0 %v101
  %119 = vmatpush.bf16.msra.mxu0 %v100
  %120 = vmatpush.bf16.msra.mxu0 %v99
  %121 = vmatpush.bf16.msra.mxu0 %v98
  %122 = vmatmul.bf16.gmra.mxu0 %v58
  %v123 = vpop.f32.mrf.mxu0
  %v124 = vadd.f32 %v40, %v123
  %v125 = vpop.f32.mrf.mxu0
  %v126 = vadd.f32 %v40, %v125
  %127 = vmatmul.bf16.gmra.mxu0 %v59
  %v128 = vpop.f32.mrf.mxu0
  %v129 = vadd.f32 %v40, %v128
  %v130 = vpop.f32.mrf.mxu0
  %v131 = vadd.f32 %v40, %v130
  %132 = vmatmul.bf16.gmra.mxu0 %v60
  %v133 = vpop.f32.mrf.mxu0
  %v134 = vadd.f32 %v40, %v133
  %v135 = vpop.f32.mrf.mxu0
  %v136 = vadd.f32 %v40, %v135
  %137 = vmatmul.bf16.gmra.mxu0 %v61
  %v138 = vpop.f32.mrf.mxu0
  %v139 = vadd.f32 %v40, %v138
  %v140 = vpop.f32.mrf.mxu0
  %v141 = vadd.f32 %v40, %v140
  %142 = vdwg.mxu0
  %143 = vst [vmem:[%s3] sm:$0xff] %v124
  %144 = vst [vmem:[%s3 + $0x8] sm:$0xff] %v126
  %145 = vst [vmem:[%s3 + $0x10] sm:$0xff] %v129
  %146 = vst [vmem:[%s3 + $0x18] sm:$0xff] %v131
  %147 = vst [vmem:[%s3 + $0x20] sm:$0xff] %v134
  %148 = vst [vmem:[%s3 + $0x28] sm:$0xff] %v136
  %149 = vst [vmem:[%s3 + $0x30] sm:$0xff] %v139
  %150 = vst [vmem:[%s3 + $0x38] sm:$0xff] %v141
  // Predicated region
  $region14: #{rnn_model_forward.3} parent=0 // pred_check
    _
  $region15: #{rnn_model_forward.3} parent=0 // pred_check_branch
    %152 = sbr.rel (0) target = $region17
  $region16: #{rnn_model_forward.3} parent=0 // pred_region
    _
  $region17: #{rnn_model_forward.3} parent=0 // pred_fallthru
    _
  // Predicated region
  $region18: #{rnn_model_forward.3} parent=0 // pred_check
    _
  $region19: #{rnn_model_forward.3} parent=0 // pred_check_branch
    %154 = sbr.rel (0) target = $region21
  $region20: #{rnn_model_forward.3} parent=0 // pred_region
    _
  $region21: #{rnn_model_forward.3} parent=0 // pred_fallthru
    _

// kernel: rnn_model_forward.2
$region0: #{rnn_model_forward.2}
  #allocation0 [shape = 'u32[]', space=smem, size = 0x4, offset = 0x4, fixed_abs, tag = 'smem constant byte address 0x4 - core index']
  #allocation1 [shape = 'u32[72,128]{1,0:T(1,128)}', space=vmem, size = 0x9000, scoped, tag = 'internal scratch']
  #allocation2 [shape = 'f32[8,128]{1,0:T(8,128)}', space=vmem, size = 0x1000, scoped, tag = 'scratch operand']
  %s0 = inlined_call_operand.vmem [shape: f32[8,128], index: 0, kind: input, shape index: {}]
  %s1 = inlined_call_operand.vmem [shape: bf16[8,8,128], index: 1, kind: input, shape index: {}]
  %s2 = inlined_call_operand.vmem [shape: bf16[128,128], index: 2, kind: input, shape index: {}]
  %s3 = inlined_call_operand.vmem [shape: bf16[8,8,128], index: 3, kind: output, shape index: {0}]
  %s4 = inlined_call_operand.vmem [shape: f32[8,128], index: 4, kind: output, shape index: {1}]
  %5 = xla_tuple %s3, %s4
  %s6 = sld [smem:[#allocation0]]
  $region38: #{rnn_model_forward.2} parent=0
    _
  %s8 = ssub.s32 1, %s6
  %s9 = scalar_select 0, %s8, %s6
  // Predicated region
  $region2: #{rnn_model_forward.2} parent=0 // pred_check
    _
  $region3: #{rnn_model_forward.2} parent=0 // pred_check_branch
    %11 = sbr.rel (0) target = $region5
  $region4: #{rnn_model_forward.2} parent=0 // pred_region
    _
  $region5: #{rnn_model_forward.2} parent=0 // pred_fallthru
    _
  // Predicated region
  $region6: #{rnn_model_forward.2} parent=0 // pred_check
    _
  $region7: #{rnn_model_forward.2} parent=0 // pred_check_branch
    %13 = sbr.rel (0) target = $region9
  $region8: #{rnn_model_forward.2} parent=0 // pred_region
    _
  $region9: #{rnn_model_forward.2} parent=0 // pred_fallthru
    _
  // Predicated region
  $region10: #{rnn_model_forward.2} parent=0 // pred_check
    _
  $region11: #{rnn_model_forward.2} parent=0 // pred_check_branch
    %15 = sbr.rel (0) target = $region13
  $region12: #{rnn_model_forward.2} parent=0 // pred_region
    _
  $region13: #{rnn_model_forward.2} parent=0 // pred_fallthru
    _
  %p16 = scmp.eq.s32.totalorder 0, 0
  // Predicated region
  $region14: #{rnn_model_forward.2} parent=0 // pred_check
    %p17 = pneg %p16
  $region15: #{rnn_model_forward.2} parent=0 // pred_check_branch
    %19 = sbr.rel (%p17) target = $region17
  $region16: #{rnn_model_forward.2} parent=0 // pred_region
    %v20 = vld [vmem:[%s0] sm:$0xff]
    %21 = vst [vmem:[#allocation2] sm:$0xff] %v20
  $region17: #{rnn_model_forward.2} parent=0 // pred_fallthru
    _
  %v22 = vld [vmem:[%s2] sm:$0xf]
  %v23 = vld [vmem:[%s2 + $0x4] sm:$0xf]
  %v24 = vld [vmem:[%s2 + $0x8] sm:$0xf]
  %v25 = vld [vmem:[%s2 + $0xc] sm:$0xf]
  %v26 = vld [vmem:[%s2 + $0x10] sm:$0xf]
  %v27 = vld [vmem:[%s2 + $0x14] sm:$0xf]
  %v28 = vld [vmem:[%s2 + $0x18] sm:$0xf]
  %v29 = vld [vmem:[%s2 + $0x1c] sm:$0xf]
  %v30 = vld [vmem:[%s2 + $0x20] sm:$0xf]
  %v31 = vld [vmem:[%s2 + $0x24] sm:$0xf]
  %v32 = vld [vmem:[%s2 + $0x28] sm:$0xf]
  %v33 = vld [vmem:[%s2 + $0x2c] sm:$0xf]
  %v34 = vld [vmem:[%s2 + $0x30] sm:$0xf]
  %v35 = vld [vmem:[%s2 + $0x34] sm:$0xf]
  %v36 = vld [vmem:[%s2 + $0x38] sm:$0xf]
  %v37 = vld [vmem:[%s2 + $0x3c] sm:$0xf]
  %v38 = vld [vmem:[%s1] sm:$0xf]
  %v39 = vunpack.c.l.bf16 %v38
  %v40 = vld [vmem:[#allocation2] sm:$0xff]
  %v41 = vpack.c.bf16 %v40, %v40
  %v58 = vunpack.c.l.b16 %v22
  %v59 = vunpack.c.l.b16 %v23
  %v60 = vunpack.c.l.b16 %v24
  %v61 = vunpack.c.l.b16 %v25
  %v62 = vunpack.c.l.b16 %v26
  %v63 = vunpack.c.l.b16 %v27
  %v64 = vunpack.c.l.b16 %v28
  %v65 = vunpack.c.l.b16 %v29
  %v66 = vunpack.c.l.b16 %v30
  %v67 = vunpack.c.l.b16 %v31
  %v68 = vunpack.c.l.b16 %v32
  %v69 = vunpack.c.l.b16 %v33
  %v70 = vunpack.c.l.b16 %v34
  %v71 = vunpack.c.l.b16 %v35
  %v72 = vunpack.c.l.b16 %v36
  %v73 = vunpack.c.l.b16 %v37
  %v74 = vpack.c.b16 %v59, %v58
  %v75 = vpack.c.b16 %v61, %v60
  %v76 = vpack.c.b16 %v63, %v62
  %v77 = vpack.c.b16 %v65, %v64
  %v78 = vpack.c.b16 %v67, %v66
  %v79 = vpack.c.b16 %v69, %v68
  %v80 = vpack.c.b16 %v71, %v70
  %v81 = vpack.c.b16 %v73, %v72
  %90 = vmatpush.bf16.msra.mxu0 %v81
  %91 = vmatpush.bf16.msra.mxu0 %v80
  %92 = vmatpush.bf16.msra.mxu0 %v79
  %93 = vmatpush.bf16.msra.mxu0 %v78
  %94 = vmatpush.bf16.msra.mxu0 %v77
  %95 = vmatpush.bf16.msra.mxu0 %v76
  %96 = vmatpush.bf16.msra.mxu0 %v75
  %97 = vmatpush.bf16.msra.mxu0 %v74
  %98 = vmatmul.bf16.gmra.mxu0 %v41
  %v99 = vpop.f32.mrf.mxu0
  %v100 = vadd.f32 0.0, %v99
  %v101 = vpop.f32.mrf.mxu0
  %102 = vdwg.mxu0
  %v103 = vadd.f32 %v39, %v100
  %v104 = vtanh.pop %v103
  %105 = vst [vmem:[#allocation2] sm:$0xff] %v104
  %v106 = vpack.c.bf16 %v104, %v104
  %107 = vst [vmem:[%s3] sm:$0xf] %v106
  %s108 = scalar_lea.vmem %s1, 4
  %v109 = vld [vmem:[%s108] sm:$0xf]
  %v110 = vunpack.c.l.bf16 %v109
  %v111 = vld [vmem:[#allocation2] sm:$0xff]
  %v112 = vpack.c.bf16 %v111, %v111
  %113 = vmatpush.bf16.msra.mxu0 %v81
  %114 = vmatpush.bf16.msra.mxu0 %v80
  %115 = vmatpush.bf16.msra.mxu0 %v79
  %116 = vmatpush.bf16.msra.mxu0 %v78
  %117 = vmatpush.bf16.msra.mxu0 %v77
  %118 = vmatpush.bf16.msra.mxu0 %v76
  %119 = vmatpush.bf16.msra.mxu0 %v75
  %120 = vmatpush.bf16.msra.mxu0 %v74
  %121 = vmatmul.bf16.gmra.mxu0 %v112
  %v122 = vpop.f32.mrf.mxu0
  %v123 = vadd.f32 0.0, %v122
  %v124 = vpop.f32.mrf.mxu0
  %125 = vdwg.mxu0
  %v126 = vadd.f32 %v110, %v123
  %v127 = vtanh.pop %v126
  %128 = vst [vmem:[#allocation2] sm:$0xff] %v127
  %v129 = vpack.c.bf16 %v127, %v127
  %s130 = scalar_lea.vmem %s3, 4
  %131 = vst [vmem:[%s130] sm:$0xf] %v129
  %s132 = scalar_lea.vmem %s1, 8
  %v133 = vld [vmem:[%s132] sm:$0xf]
  %v134 = vunpack.c.l.bf16 %v133
  %v135 = vld [vmem:[#allocation2] sm:$0xff]
  %v136 = vpack.c.bf16 %v135, %v135
  %137 = vmatpush.bf16.msra.mxu0 %v81
  %138 = vmatpush.bf16.msra.mxu0 %v80
  %139 = vmatpush.bf16.msra.mxu0 %v79
  %140 = vmatpush.bf16.msra.mxu0 %v78
  %141 = vmatpush.bf16.msra.mxu0 %v77
  %142 = vmatpush.bf16.msra.mxu0 %v76
  %143 = vmatpush.bf16.msra.mxu0 %v75
  %144 = vmatpush.bf16.msra.mxu0 %v74
  %145 = vmatmul.bf16.gmra.mxu0 %v136
  %v146 = vpop.f32.mrf.mxu0
  %v147 = vadd.f32 0.0, %v146
  %v148 = vpop.f32.mrf.mxu0
  %149 = vdwg.mxu0
  %v150 = vadd.f32 %v134, %v147
  %v151 = vtanh.pop %v150
  %152 = vst [vmem:[#allocation2] sm:$0xff] %v151
  %v153 = vpack.c.bf16 %v151, %v151
  %s154 = scalar_lea.vmem %s3, 8
  %155 = vst [vmem:[%s154] sm:$0xf] %v153
  %s156 = scalar_lea.vmem %s1, 12
  %v157 = vld [vmem:[%s156] sm:$0xf]
  %v158 = vunpack.c.l.bf16 %v157
  %v159 = vld [vmem:[#allocation2] sm:$0xff]
  %v160 = vpack.c.bf16 %v159, %v159
  %161 = vmatpush.bf16.msra.mxu0 %v81
  %162 = vmatpush.bf16.msra.mxu0 %v80
  %163 = vmatpush.bf16.msra.mxu0 %v79
  %164 = vmatpush.bf16.msra.mxu0 %v78
  %165 = vmatpush.bf16.msra.mxu0 %v77
  %166 = vmatpush.bf16.msra.mxu0 %v76
  %167 = vmatpush.bf16.msra.mxu0 %v75
  %168 = vmatpush.bf16.msra.mxu0 %v74
  %169 = vmatmul.bf16.gmra.mxu0 %v160
  %v170 = vpop.f32.mrf.mxu0
  %v171 = vadd.f32 0.0, %v170
  %v172 = vpop.f32.mrf.mxu0
  %173 = vdwg.mxu0
  %v174 = vadd.f32 %v158, %v171
  %v175 = vtanh.pop %v174
  %176 = vst [vmem:[#allocation2] sm:$0xff] %v175
  %v177 = vpack.c.bf16 %v175, %v175
  %s178 = scalar_lea.vmem %s3, 12
  %179 = vst [vmem:[%s178] sm:$0xf] %v177
  %s180 = scalar_lea.vmem %s1, 16
  %v181 = vld [vmem:[%s180] sm:$0xf]
  %v182 = vunpack.c.l.bf16 %v181
  %v183 = vld [vmem:[#allocation2] sm:$0xff]
  %v184 = vpack.c.bf16 %v183, %v183
  %185 = vmatpush.bf16.msra.mxu0 %v81
  %186 = vmatpush.bf16.msra.mxu0 %v80
  %187 = vmatpush.bf16.msra.mxu0 %v79
  %188 = vmatpush.bf16.msra.mxu0 %v78
  %189 = vmatpush.bf16.msra.mxu0 %v77
  %190 = vmatpush.bf16.msra.mxu0 %v76
  %191 = vmatpush.bf16.msra.mxu0 %v75
  %192 = vmatpush.bf16.msra.mxu0 %v74
  %193 = vmatmul.bf16.gmra.mxu0 %v184
  %v194 = vpop.f32.mrf.mxu0
  %v195 = vadd.f32 0.0, %v194
  %v196 = vpop.f32.mrf.mxu0
  %197 = vdwg.mxu0
  %v198 = vadd.f32 %v182, %v195
  %v199 = vtanh.pop %v198
  %200 = vst [vmem:[#allocation2] sm:$0xff] %v199
  %v201 = vpack.c.bf16 %v199, %v199
  %s202 = scalar_lea.vmem %s3, 16
  %203 = vst [vmem:[%s202] sm:$0xf] %v201
  %s204 = scalar_lea.vmem %s1, 20
  %v205 = vld [vmem:[%s204] sm:$0xf]
  %v206 = vunpack.c.l.bf16 %v205
  %v207 = vld [vmem:[#allocation2] sm:$0xff]
  %v208 = vpack.c.bf16 %v207, %v207
  %209 = vmatpush.bf16.msra.mxu0 %v81
  %210 = vmatpush.bf16.msra.mxu0 %v80
  %211 = vmatpush.bf16.msra.mxu0 %v79
  %212 = vmatpush.bf16.msra.mxu0 %v78
  %213 = vmatpush.bf16.msra.mxu0 %v77
  %214 = vmatpush.bf16.msra.mxu0 %v76
  %215 = vmatpush.bf16.msra.mxu0 %v75
  %216 = vmatpush.bf16.msra.mxu0 %v74
  %217 = vmatmul.bf16.gmra.mxu0 %v208
  %v218 = vpop.f32.mrf.mxu0
  %v219 = vadd.f32 0.0, %v218
  %v220 = vpop.f32.mrf.mxu0
  %221 = vdwg.mxu0
  %v222 = vadd.f32 %v206, %v219
  %v223 = vtanh.pop %v222
  %224 = vst [vmem:[#allocation2] sm:$0xff] %v223
  %v225 = vpack.c.bf16 %v223, %v223
  %s226 = scalar_lea.vmem %s3, 20
  %227 = vst [vmem:[%s226] sm:$0xf] %v225
  %s228 = scalar_lea.vmem %s1, 24
  %v229 = vld [vmem:[%s228] sm:$0xf]
  %v230 = vunpack.c.l.bf16 %v229
  %v231 = vld [vmem:[#allocation2] sm:$0xff]
  %v232 = vpack.c.bf16 %v231, %v231
  %233 = vmatpush.bf16.msra.mxu0 %v81
  %234 = vmatpush.bf16.msra.mxu0 %v80
  %235 = vmatpush.bf16.msra.mxu0 %v79
  %236 = vmatpush.bf16.msra.mxu0 %v78
  %237 = vmatpush.bf16.msra.mxu0 %v77
  %238 = vmatpush.bf16.msra.mxu0 %v76
  %239 = vmatpush.bf16.msra.mxu0 %v75
  %240 = vmatpush.bf16.msra.mxu0 %v74
  %241 = vmatmul.bf16.gmra.mxu0 %v232
  %v242 = vpop.f32.mrf.mxu0
  %v243 = vadd.f32 0.0, %v242
  %v244 = vpop.f32.mrf.mxu0
  %245 = vdwg.mxu0
  %v246 = vadd.f32 %v230, %v243
  %v247 = vtanh.pop %v246
  %248 = vst [vmem:[#allocation2] sm:$0xff] %v247
  %v249 = vpack.c.bf16 %v247, %v247
  %s250 = scalar_lea.vmem %s3, 24
  %251 = vst [vmem:[%s250] sm:$0xf] %v249
  %s252 = scalar_lea.vmem %s1, 28
  %v253 = vld [vmem:[%s252] sm:$0xf]
  %v254 = vunpack.c.l.bf16 %v253
  %v255 = vld [vmem:[#allocation2] sm:$0xff]
  %v256 = vpack.c.bf16 %v255, %v255
  %257 = vmatpush.bf16.msra.mxu0 %v81
  %258 = vmatpush.bf16.msra.mxu0 %v80
  %259 = vmatpush.bf16.msra.mxu0 %v79
  %260 = vmatpush.bf16.msra.mxu0 %v78
  %261 = vmatpush.bf16.msra.mxu0 %v77
  %262 = vmatpush.bf16.msra.mxu0 %v76
  %263 = vmatpush.bf16.msra.mxu0 %v75
  %264 = vmatpush.bf16.msra.mxu0 %v74
  %265 = vmatmul.bf16.gmra.mxu0 %v256
  %v266 = vpop.f32.mrf.mxu0
  %v267 = vadd.f32 0.0, %v266
  %v268 = vpop.f32.mrf.mxu0
  %269 = vdwg.mxu0
  %v270 = vadd.f32 %v254, %v267
  %v271 = vtanh.pop %v270
  %272 = vst [vmem:[#allocation2] sm:$0xff] %v271
  %v273 = vpack.c.bf16 %v271, %v271
  %s274 = scalar_lea.vmem %s3, 28
  %275 = vst [vmem:[%s274] sm:$0xf] %v273
  // Predicated region
  $region18: #{rnn_model_forward.2} parent=0 // pred_check
    %p276 = pneg %p16
  $region19: #{rnn_model_forward.2} parent=0 // pred_check_branch
    %278 = sbr.rel (%p276) target = $region21
  $region20: #{rnn_model_forward.2} parent=0 // pred_region
    %v279 = vld [vmem:[#allocation2] sm:$0xff]
    %280 = vst [vmem:[%s4] sm:$0xff] %v279
  $region21: #{rnn_model_forward.2} parent=0 // pred_fallthru
    _
  // Predicated region
  $region22: #{rnn_model_forward.2} parent=0 // pred_check
    _
  $region23: #{rnn_model_forward.2} parent=0 // pred_check_branch
    %282 = sbr.rel (0) target = $region25
  $region24: #{rnn_model_forward.2} parent=0 // pred_region
    _
  $region25: #{rnn_model_forward.2} parent=0 // pred_fallthru
    _
  // Predicated region
  $region26: #{rnn_model_forward.2} parent=0 // pred_check
    _
  $region27: #{rnn_model_forward.2} parent=0 // pred_check_branch
    %284 = sbr.rel (0) target = $region29
  $region28: #{rnn_model_forward.2} parent=0 // pred_region
    _
  $region29: #{rnn_model_forward.2} parent=0 // pred_fallthru
    _
  // Predicated region
  $region30: #{rnn_model_forward.2} parent=0 // pred_check
    _
  $region31: #{rnn_model_forward.2} parent=0 // pred_check_branch
    %286 = sbr.rel (0) target = $region33
  $region32: #{rnn_model_forward.2} parent=0 // pred_region
    _
  $region33: #{rnn_model_forward.2} parent=0 // pred_fallthru
    _
  // Predicated region
  $region34: #{rnn_model_forward.2} parent=0 // pred_check
    _
  $region35: #{rnn_model_forward.2} parent=0 // pred_check_branch
    %288 = sbr.rel (0) target = $region37
  $region36: #{rnn_model_forward.2} parent=0 // pred_region
    _
  $region37: #{rnn_model_forward.2} parent=0 // pred_fallthru
    _

</llo_original>
